<compile_context>
chip_gen: v7x
topology: tpu7x:2x2x1
jax: 0.10.0
libtpu: 0.0.40
codegen_flags: <defaults>
</compile_context>

<pallas_src>
import functools

import jax
import jax.numpy as jnp
from jax import lax
from jax.experimental import pallas as pl
from jax.experimental.pallas import tpu as pltpu

# Module hyper-parameters (defaults of DerivativeFEWithMemory)
EXCITATION_SIZE = 1
OUTPUT_SIZE = 1
HIDDEN_SIZE = 30
MEMORY_LENGTH = 10
INPUT_SIZE = (MEMORY_LENGTH + 1) * (EXCITATION_SIZE + OUTPUT_SIZE)  # 22

TIME_CHUNK = 128  # timesteps per grid step -> (B, 128*OUTPUT_SIZE) lane-dense output tiles


def _fused_scan_kernel(y0_ref, exc_ref,
                       w1_ref, b1_ref, w2_ref, b2_ref, w3_ref, b3_ref,
                       out_ref, mem_ref,
                       y_state,
                       *, seq_len, chunk):
    c = pl.program_id(1)  # time-chunk index ("arbitrary" axis)

    @pl.when(c == 0)
    def _init():
        # First forward call: self.memory is None -> zeros. Rolling zeros is a no-op,
        # so the unconditional per-step shift below stays exactly faithful at t == 0.
        mem_ref[...] = jnp.zeros_like(mem_ref)
        y_state[...] = y0_ref[...]

    # Weights / biases stay VMEM-resident for the whole grid; load once per chunk,
    # hoisted out of the per-step loop (JAX does not CSE broadcasts inside loops).
    w1 = w1_ref[...]; b1 = b1_ref[...]
    w2 = w2_ref[...]; b2 = b2_ref[...]
    w3 = w3_ref[...]; b3 = b3_ref[...]

    bb = y0_ref.shape[0]

    # Constant shift matrix implementing torch.roll(memory, shifts=OUTPUT_SIZE, dims=1)
    # with the first OUTPUT_SIZE+EXCITATION_SIZE columns zeroed (they get overwritten):
    # new_mem[:, j] = old_mem[:, j - OUTPUT_SIZE]  for j >= OUTPUT_SIZE + EXCITATION_SIZE.
    row = lax.broadcasted_iota(jnp.int32, (INPUT_SIZE, INPUT_SIZE), 0)
    col = lax.broadcasted_iota(jnp.int32, (INPUT_SIZE, INPUT_SIZE), 1)
    shift_mat = jnp.where(
        (col == row + OUTPUT_SIZE) & (col >= OUTPUT_SIZE + EXCITATION_SIZE), 1.0, 0.0)

    mem_lanes = lax.broadcasted_iota(jnp.int32, (1, INPUT_SIZE), 1)
    out_lanes = lax.broadcasted_iota(jnp.int32, (1, chunk * OUTPUT_SIZE), 1)

    mem0 = mem_ref[...]
    y0v = y_state[...]
    acc0 = jnp.zeros((bb, chunk * OUTPUT_SIZE), jnp.float32)

    # Last chunk may be partial: only run the valid steps of this chunk.
    steps = jnp.minimum(chunk, seq_len - c * chunk)

    def step(s, carry):
        mem, y, acc = carry
        exc_t = exc_ref[s]                                     # (bb, EXCITATION_SIZE)

        # memory = roll(memory, OUTPUT_SIZE); memory[:, :OUT+EXC] = cat([y, exc], dim=1)
        mem = jnp.dot(mem, shift_mat, preferred_element_type=jnp.float32)
        for j in range(OUTPUT_SIZE):
            mem = mem + jnp.where(mem_lanes == j,
                                  jnp.broadcast_to(y[:, j:j + 1], mem.shape), 0.0)
        for j in range(EXCITATION_SIZE):
            mem = mem + jnp.where(mem_lanes == OUTPUT_SIZE + j,
                                  jnp.broadcast_to(exc_t[:, j:j + 1], mem.shape), 0.0)

        # densely_connected_layers: Linear -> tanh -> Linear -> tanh -> Linear
        h1 = jnp.tanh(jnp.dot(mem, w1, preferred_element_type=jnp.float32) + b1)
        h2 = jnp.tanh(jnp.dot(h1, w2, preferred_element_type=jnp.float32) + b2)
        out = jnp.dot(h2, w3, preferred_element_type=jnp.float32) + b3    # (bb, OUT)

        # Lane-scatter this step's output into the chunk accumulator (pure VPU select;
        # the HBM writeback below is one dense 128-lane tile per chunk).
        for j in range(OUTPUT_SIZE):
            acc = acc + jnp.where(out_lanes == s * OUTPUT_SIZE + j,
                                  jnp.broadcast_to(out[:, j:j + 1], acc.shape), 0.0)

        # Next step's y is this step's output (same chaining as the per-step driver).
        return mem, out, acc

    mem, y, acc = lax.fori_loop(0, steps, step, (mem0, y0v, acc0))

    out_ref[...] = acc
    mem_ref[...] = mem
    y_state[...] = y


def derivative_fe_sequence(y0, excitation, params, *, chunk=TIME_CHUNK):
    """Fused sequence of DerivativeFEWithMemory.forward calls in one pallas_call.

    Step t evaluates forward(t, y_t) with y_0 = y0 and y_{t+1} = forward(t, y_t);
    the module's self.memory buffer is carried across steps exactly as in PyTorch.
    Returns (outputs (T, B, OUTPUT_SIZE), final memory (B, INPUT_SIZE)).
    """
    w1, b1, w2, b2, w3, b3 = params
    seq_len, batch, exc_sz = excitation.shape
    assert exc_sz == EXCITATION_SIZE
    assert y0.shape == (batch, OUTPUT_SIZE)
    assert (chunk * OUTPUT_SIZE) % 128 == 0, "keep HBM output stores lane-dense"

    n_chunks = pl.cdiv(seq_len, chunk)
    t_pad = n_chunks * chunk
    exc_padded = jnp.pad(excitation.astype(jnp.float32),
                         ((0, t_pad - seq_len), (0, 0), (0, 0)))

    kernel = functools.partial(_fused_scan_kernel, seq_len=seq_len, chunk=chunk)
    const = lambda b, c: (0, 0)

    grid_spec = pltpu.PrefetchScalarGridSpec(
        num_scalar_prefetch=0,
        # (batch blocks, time chunks): one batch block here; with large batches this
        # axis can be split so v7x's two TensorCores run independent recurrences.
        grid=(1, n_chunks),
        in_specs=[
            pl.BlockSpec((batch, OUTPUT_SIZE), lambda b, c: (b, 0)),               # y0
            pl.BlockSpec((chunk, batch, EXCITATION_SIZE), lambda b, c: (c, 0, 0)),  # excitation, streamed per chunk
            pl.BlockSpec((INPUT_SIZE, HIDDEN_SIZE), const),                        # w1 (VMEM-resident)
            pl.BlockSpec((1, HIDDEN_SIZE), const),                                 # b1
            pl.BlockSpec((HIDDEN_SIZE, HIDDEN_SIZE), const),                       # w2
            pl.BlockSpec((1, HIDDEN_SIZE), const),                                 # b2
            pl.BlockSpec((HIDDEN_SIZE, OUTPUT_SIZE), const),                       # w3
            pl.BlockSpec((1, OUTPUT_SIZE), const),                                 # b3
        ],
        out_specs=[
            pl.BlockSpec((batch, chunk * OUTPUT_SIZE), lambda b, c: (b, c)),       # per-step outputs (lane-dense)
            pl.BlockSpec((batch, INPUT_SIZE), lambda b, c: (b, 0)),                # final memory (resident state)
        ],
        scratch_shapes=[pltpu.VMEM((batch, OUTPUT_SIZE), jnp.float32)],            # y carry
    )

    outs_flat, mem_final = pl.pallas_call(
        kernel,
        out_shape=(jax.ShapeDtypeStruct((batch, t_pad * OUTPUT_SIZE), jnp.float32),
                   jax.ShapeDtypeStruct((batch, INPUT_SIZE), jnp.float32)),
        grid_spec=grid_spec,
        compiler_params=pltpu.CompilerParams(
            dimension_semantics=("parallel", "arbitrary")),
    )(y0.astype(jnp.float32), exc_padded, w1, b1, w2, b2, w3, b3)

    outputs = outs_flat[:, :seq_len * OUTPUT_SIZE]
    outputs = outputs.reshape(batch, seq_len, OUTPUT_SIZE).transpose(1, 0, 2)
    return outputs, mem_final


def init_params(key):
    """Deterministic parameter init (shapes match the module's nn.Linear layers)."""
    k1, k2, k3, k4, k5, k6 = jax.random.split(key, 6)

    def lin(kw, kb, fan_in, fan_out):
        bound = 1.0 / jnp.sqrt(fan_in)
        w = jax.random.uniform(kw, (fan_in, fan_out), jnp.float32, -bound, bound)
        b = jax.random.uniform(kb, (1, fan_out), jnp.float32, -bound, bound)
        return w, b

    w1, b1 = lin(k1, k2, INPUT_SIZE, HIDDEN_SIZE)
    w2, b2 = lin(k3, k4, HIDDEN_SIZE, HIDDEN_SIZE)
    w3, b3 = lin(k5, k6, HIDDEN_SIZE, OUTPUT_SIZE)
    return (w1, b1, w2, b2, w3, b3)


def derivative_fe_forward_ref(t, y, excitation, memory, params):
    """Literal pure-JAX transcription of DerivativeFEWithMemory.forward (faithful to
    shifts = y.shape[FEATURE_DIMENSION] = OUTPUT_SIZE, as in the PyTorch module)."""
    batch = y.shape[0]
    if memory is None:
        memory = jnp.zeros((batch, INPUT_SIZE), jnp.float32)
    else:
        memory = jnp.roll(memory, shift=y.shape[1], axis=1)
    exc_t = excitation[t]
    assert y.shape[1] == OUTPUT_SIZE and exc_t.shape[1] == EXCITATION_SIZE
    mlp_input = jnp.concatenate([y, exc_t], axis=1)
    memory = memory.at[:, :mlp_input.shape[1]].set(mlp_input)

    w1, b1, w2, b2, w3, b3 = params
    hp = lax.Precision.HIGHEST
    h1 = jnp.tanh(jnp.dot(memory, w1, precision=hp) + b1)
    h2 = jnp.tanh(jnp.dot(h1, w2, precision=hp) + b2)
    out = jnp.dot(h2, w3, precision=hp) + b3
    return out, memory


if __name__ == "__main__":
    key = jax.random.PRNGKey(0)
    kp, ky, ke = jax.random.split(key, 3)

    BATCH = 2
    T = 8
    params = init_params(kp)
    y0 = jax.random.normal(ky, (BATCH, OUTPUT_SIZE), jnp.float32)
    excitation = jax.random.normal(ke, (T, BATCH, EXCITATION_SIZE), jnp.float32)

    # Fused Pallas kernel: all T steps in one pallas_call.
    outs, mem_final = derivative_fe_sequence(y0, excitation, params)
    outs = jax.block_until_ready(outs)
    mem_final = jax.block_until_ready(mem_final)

    # Step-by-step pure-JAX reference of the module's forward with identical chaining.
    y = y0
    mem = None
    ref_outs = []
    for t in range(T):
        y, mem = derivative_fe_forward_ref(t, y, excitation, mem, params)
        ref_outs.append(y)
    ref_outs = jnp.stack(ref_outs, axis=0)

    assert outs.shape == (T, BATCH, OUTPUT_SIZE)
    assert jnp.allclose(outs, ref_outs, rtol=1e-4, atol=1e-4), "output mismatch vs reference"
    assert jnp.allclose(mem_final, mem, rtol=1e-4, atol=1e-4), "memory mismatch vs reference"

    print("KERNEL_OK")
</pallas_src>

<mosaic_0001>
module attributes {stable_mosaic.version = 11 : i64} {
  func.func @_fused_scan_kernel(%arg0: i32, %arg1: i32, %arg2: memref<2x1xf32, #tpu.memory_space<vmem>>, %arg3: memref<128x2x1xf32, #tpu.memory_space<vmem>>, %arg4: memref<22x30xf32, #tpu.memory_space<vmem>>, %arg5: memref<1x30xf32, #tpu.memory_space<vmem>>, %arg6: memref<30x30xf32, #tpu.memory_space<vmem>>, %arg7: memref<1x30xf32, #tpu.memory_space<vmem>>, %arg8: memref<30x1xf32, #tpu.memory_space<vmem>>, %arg9: memref<1x1xf32, #tpu.memory_space<vmem>>, %arg10: memref<2x128xf32, #tpu.memory_space<vmem>>, %arg11: memref<2x22xf32, #tpu.memory_space<vmem>>, %arg12: memref<2x1xf32, #tpu.memory_space<vmem>>) attributes {dimension_semantics = [#tpu.dimension_semantics<parallel>, #tpu.dimension_semantics<arbitrary>], iteration_bounds = array<i64: 1, 1>, scalar_prefetch = 0 : i64, scratch_operands = 1 : i64, tpu.core_type = #tpu.core_type<tc>, window_params = [{transform_indices = @transform_0, window_bounds = array<i64: 2, 1>}, {transform_indices = @transform_1, window_bounds = array<i64: 128, 2, 1>}, {pipeline_mode = #tpu.pipeline_mode<synchronous>, transform_indices = @transform_2, window_bounds = array<i64: 22, 30>}, {pipeline_mode = #tpu.pipeline_mode<synchronous>, transform_indices = @transform_3, window_bounds = array<i64: 1, 30>}, {pipeline_mode = #tpu.pipeline_mode<synchronous>, transform_indices = @transform_4, window_bounds = array<i64: 30, 30>}, {pipeline_mode = #tpu.pipeline_mode<synchronous>, transform_indices = @transform_5, window_bounds = array<i64: 1, 30>}, {pipeline_mode = #tpu.pipeline_mode<synchronous>, transform_indices = @transform_6, window_bounds = array<i64: 30, 1>}, {pipeline_mode = #tpu.pipeline_mode<synchronous>, transform_indices = @transform_7, window_bounds = array<i64: 1, 1>}, {transform_indices = @transform_8, window_bounds = array<i64: 2, 128>}, {transform_indices = @transform_9, window_bounds = array<i64: 2, 22>}]} {
    %c0_i32 = arith.constant 0 : i32
    %0 = arith.cmpi eq, %arg1, %c0_i32 : i32
    %1 = arith.extui %0 : i1 to i32
    %c0_i32_0 = arith.constant 0 : i32
    %2 = arith.cmpi ne, %1, %c0_i32_0 : i32
    scf.if %2 {
      %cst_27 = arith.constant 0.000000e+00 : f32
      %34 = vector.broadcast %cst_27 : f32 to vector<2x22xf32>
      %c0_28 = arith.constant 0 : index
      %c0_29 = arith.constant 0 : index
      %35 = vector.load %arg11[%c0_28, %c0_29] : memref<2x22xf32, #tpu.memory_space<vmem>>, vector<2x22xf32>
      tpu.vector_store %arg11[%c0_28, %c0_29], %34 {strides = array<i32>} : memref<2x22xf32, #tpu.memory_space<vmem>>, vector<2x22xf32>,
      %c0_30 = arith.constant 0 : index
      %c0_31 = arith.constant 0 : index
      %36 = vector.load %arg2[%c0_30, %c0_31] : memref<2x1xf32, #tpu.memory_space<vmem>>, vector<2x1xf32>
      %c0_32 = arith.constant 0 : index
      %c0_33 = arith.constant 0 : index
      %37 = vector.load %arg12[%c0_32, %c0_33] : memref<2x1xf32, #tpu.memory_space<vmem>>, vector<2x1xf32>
      tpu.vector_store %arg12[%c0_32, %c0_33], %36 {strides = array<i32>} : memref<2x1xf32, #tpu.memory_space<vmem>>, vector<2x1xf32>,
    } else {
    }
    %c0 = arith.constant 0 : index
    %c0_1 = arith.constant 0 : index
    %3 = vector.load %arg4[%c0, %c0_1] : memref<22x30xf32, #tpu.memory_space<vmem>>, vector<22x30xf32>
    %c0_2 = arith.constant 0 : index
    %c0_3 = arith.constant 0 : index
    %4 = vector.load %arg5[%c0_2, %c0_3] : memref<1x30xf32, #tpu.memory_space<vmem>>, vector<1x30xf32>
    %c0_4 = arith.constant 0 : index
    %c0_5 = arith.constant 0 : index
    %5 = vector.load %arg6[%c0_4, %c0_5] : memref<30x30xf32, #tpu.memory_space<vmem>>, vector<30x30xf32>
    %c0_6 = arith.constant 0 : index
    %c0_7 = arith.constant 0 : index
    %6 = vector.load %arg7[%c0_6, %c0_7] : memref<1x30xf32, #tpu.memory_space<vmem>>, vector<1x30xf32>
    %c0_8 = arith.constant 0 : index
    %c0_9 = arith.constant 0 : index
    %7 = vector.load %arg8[%c0_8, %c0_9] : memref<30x1xf32, #tpu.memory_space<vmem>>, vector<30x1xf32>
    %c0_10 = arith.constant 0 : index
    %c0_11 = arith.constant 0 : index
    %8 = vector.load %arg9[%c0_10, %c0_11] : memref<1x1xf32, #tpu.memory_space<vmem>>, vector<1x1xf32>
    %9 = tpu.iota {dimensions = array<i32: 0>} : vector<22x22xi32>
    %10 = tpu.iota {dimensions = array<i32: 1>} : vector<22x22xi32>
    %c1_i32 = arith.constant 1 : i32
    %11 = vector.broadcast %c1_i32 : i32 to vector<22x22xi32>
    %12 = arith.addi %9, %11 : vector<22x22xi32>
    %13 = arith.cmpi eq, %10, %12 : vector<22x22xi32>
    %c2_i32 = arith.constant 2 : i32
    %14 = vector.broadcast %c2_i32 : i32 to vector<22x22xi32>
    %15 = arith.cmpi sge, %10, %14 : vector<22x22xi32>
    %16 = arith.andi %13, %15 : vector<22x22xi1>
    %cst = arith.constant 1.000000e+00 : f32
    %cst_12 = arith.constant 0.000000e+00 : f32
    %17 = vector.broadcast %cst : f32 to vector<22x22xf32>
    %18 = vector.broadcast %cst_12 : f32 to vector<22x22xf32>
    %19 = arith.select %16, %17, %18 : vector<22x22xi1>, vector<22x22xf32>
    %20 = tpu.iota {dimensions = array<i32: 1>} : vector<1x22xi32>
    %21 = tpu.iota {dimensions = array<i32: 1>} : vector<1x128xi32>
    %c0_13 = arith.constant 0 : index
    %c0_14 = arith.constant 0 : index
    %22 = vector.load %arg11[%c0_13, %c0_14] : memref<2x22xf32, #tpu.memory_space<vmem>>, vector<2x22xf32>
    %c0_15 = arith.constant 0 : index
    %c0_16 = arith.constant 0 : index
    %23 = vector.load %arg12[%c0_15, %c0_16] : memref<2x1xf32, #tpu.memory_space<vmem>>, vector<2x1xf32>
    %cst_17 = arith.constant 0.000000e+00 : f32
    %24 = vector.broadcast %cst_17 : f32 to vector<2x128xf32>
    %c128_i32 = arith.constant 128 : i32
    %25 = arith.muli %arg1, %c128_i32 : i32
    %c8_i32 = arith.constant 8 : i32
    %26 = arith.subi %c8_i32, %25 : i32
    %c128_i32_18 = arith.constant 128 : i32
    %27 = arith.minsi %c128_i32_18, %26 : i32
    %c0_i32_19 = arith.constant 0 : i32
    %28 = arith.subi %27, %c0_i32_19 : i32
    %29 = arith.addi %c0_i32_19, %28 : i32
    %c1_i32_20 = arith.constant 1 : i32
    %30:3 = scf.for %arg13 = %c0_i32_19 to %29 step %c1_i32_20 iter_args(%arg14 = %22, %arg15 = %23, %arg16 = %24) -> (vector<2x22xf32>, vector<2x1xf32>, vector<2x128xf32>)  : i32 {
      %34 = arith.index_cast %arg13 : i32 to index
      %c0_27 = arith.constant 0 : index
      %c0_28 = arith.constant 0 : index
      %35 = vector.load %arg3[%34, %c0_27, %c0_28] : memref<128x2x1xf32, #tpu.memory_space<vmem>>, vector<1x2x1xf32>
      %36 = vector.shape_cast %35 : vector<1x2x1xf32> to vector<2x1xf32>
      %cst_29 = arith.constant dense<0.000000e+00> : vector<2x22xf32>
      %37 = tpu.matmul %arg14, %19, %cst_29 {dimension_numbers = #tpu.dot_dimension_numbers<[1], [0], [0], [1], [0, 0, 1, 1], [], []>} : vector<2x22xf32>, vector<22x22xf32>, vector<2x22xf32> -> vector<2x22xf32>
      %c0_i32_30 = arith.constant 0 : i32
      %38 = vector.broadcast %c0_i32_30 : i32 to vector<1x22xi32>
      %39 = arith.cmpi eq, %20, %38 : vector<1x22xi32>
      %40 = vector.shape_cast %arg15 : vector<2x1xf32> to vector<2x1xf32>
      %41 = vector.broadcast %40 : vector<2x1xf32> to vector<2x22xf32>
      %cst_31 = arith.constant 0.000000e+00 : f32
      %42 = vector.shape_cast %39 : vector<1x22xi1> to vector<1x22xi1>
      %43 = vector.broadcast %42 : vector<1x22xi1> to vector<2x22xi1>
      %44 = vector.broadcast %cst_31 : f32 to vector<2x22xf32>
      %45 = arith.select %43, %41, %44 : vector<2x22xi1>, vector<2x22xf32>
      %46 = arith.addf %37, %45 : vector<2x22xf32>
      %c1_i32_32 = arith.constant 1 : i32
      %47 = vector.broadcast %c1_i32_32 : i32 to vector<1x22xi32>
      %48 = arith.cmpi eq, %20, %47 : vector<1x22xi32>
      %49 = vector.shape_cast %36 : vector<2x1xf32> to vector<2x1xf32>
      %50 = vector.broadcast %49 : vector<2x1xf32> to vector<2x22xf32>
      %cst_33 = arith.constant 0.000000e+00 : f32
      %51 = vector.shape_cast %48 : vector<1x22xi1> to vector<1x22xi1>
      %52 = vector.broadcast %51 : vector<1x22xi1> to vector<2x22xi1>
      %53 = vector.broadcast %cst_33 : f32 to vector<2x22xf32>
      %54 = arith.select %52, %50, %53 : vector<2x22xi1>, vector<2x22xf32>
      %55 = arith.addf %46, %54 : vector<2x22xf32>
      %cst_34 = arith.constant dense<0.000000e+00> : vector<2x30xf32>
      %56 = tpu.matmul %55, %3, %cst_34 {dimension_numbers = #tpu.dot_dimension_numbers<[1], [0], [0], [1], [0, 0, 1, 1], [], []>} : vector<2x22xf32>, vector<22x30xf32>, vector<2x30xf32> -> vector<2x30xf32>
      %57 = vector.broadcast %4 : vector<1x30xf32> to vector<2x30xf32>
      %58 = arith.addf %56, %57 : vector<2x30xf32>
      %59 = math.tanh %58 : vector<2x30xf32>
      %cst_35 = arith.constant dense<0.000000e+00> : vector<2x30xf32>
      %60 = tpu.matmul %59, %5, %cst_35 {dimension_numbers = #tpu.dot_dimension_numbers<[1], [0], [0], [1], [0, 0, 1, 1], [], []>} : vector<2x30xf32>, vector<30x30xf32>, vector<2x30xf32> -> vector<2x30xf32>
      %61 = vector.broadcast %6 : vector<1x30xf32> to vector<2x30xf32>
      %62 = arith.addf %60, %61 : vector<2x30xf32>
      %63 = math.tanh %62 : vector<2x30xf32>
      %cst_36 = arith.constant dense<0.000000e+00> : vector<2x1xf32>
      %64 = tpu.matmul %63, %7, %cst_36 {dimension_numbers = #tpu.dot_dimension_numbers<[1], [0], [0], [1], [0, 0, 1, 1], [], []>} : vector<2x30xf32>, vector<30x1xf32>, vector<2x1xf32> -> vector<2x1xf32>
      %65 = vector.broadcast %8 : vector<1x1xf32> to vector<2x1xf32>
      %66 = arith.addf %64, %65 : vector<2x1xf32>
      %c1_i32_37 = arith.constant 1 : i32
      %67 = arith.muli %arg13, %c1_i32_37 : i32
      %c0_i32_38 = arith.constant 0 : i32
      %68 = arith.addi %67, %c0_i32_38 : i32
      %69 = vector.broadcast %68 : i32 to vector<1x128xi32>
      %70 = arith.cmpi eq, %21, %69 : vector<1x128xi32>
      %71 = vector.shape_cast %66 : vector<2x1xf32> to vector<2x1xf32>
      %72 = vector.broadcast %71 : vector<2x1xf32> to vector<2x128xf32>
      %cst_39 = arith.constant 0.000000e+00 : f32
      %73 = vector.shape_cast %70 : vector<1x128xi1> to vector<1x128xi1>
      %74 = vector.broadcast %73 : vector<1x128xi1> to vector<2x128xi1>
      %75 = vector.broadcast %cst_39 : f32 to vector<2x128xf32>
      %76 = arith.select %74, %72, %75 : vector<2x128xi1>, vector<2x128xf32>
      %77 = arith.addf %arg16, %76 : vector<2x128xf32>
      scf.yield %55, %66, %77 : vector<2x22xf32>, vector<2x1xf32>, vector<2x128xf32>
    }
    %c0_21 = arith.constant 0 : index
    %c0_22 = arith.constant 0 : index
    %31 = vector.load %arg10[%c0_21, %c0_22] : memref<2x128xf32, #tpu.memory_space<vmem>>, vector<2x128xf32>
    tpu.vector_store %arg10[%c0_21, %c0_22], %30#2 {strides = array<i32>} : memref<2x128xf32, #tpu.memory_space<vmem>>, vector<2x128xf32>,
    %c0_23 = arith.constant 0 : index
    %c0_24 = arith.constant 0 : index
    %32 = vector.load %arg11[%c0_23, %c0_24] : memref<2x22xf32, #tpu.memory_space<vmem>>, vector<2x22xf32>
    tpu.vector_store %arg11[%c0_23, %c0_24], %30#0 {strides = array<i32>} : memref<2x22xf32, #tpu.memory_space<vmem>>, vector<2x22xf32>,
    %c0_25 = arith.constant 0 : index
    %c0_26 = arith.constant 0 : index
    %33 = vector.load %arg12[%c0_25, %c0_26] : memref<2x1xf32, #tpu.memory_space<vmem>>, vector<2x1xf32>
    tpu.vector_store %arg12[%c0_25, %c0_26], %30#1 {strides = array<i32>} : memref<2x1xf32, #tpu.memory_space<vmem>>, vector<2x1xf32>,
    return
  }
  func.func @transform_0(%arg0: i32, %arg1: i32) -> (i32, i32) {
    %c0_i32 = arith.constant 0 : i32
    %c0_i32_0 = arith.constant 0 : i32
    return %arg0, %c0_i32 : i32, i32
  }
  func.func @transform_1(%arg0: i32, %arg1: i32) -> (i32, i32, i32) {
    %c0_i32 = arith.constant 0 : i32
    %c0_i32_0 = arith.constant 0 : i32
    %c0_i32_1 = arith.constant 0 : i32
    return %arg1, %c0_i32, %c0_i32_0 : i32, i32, i32
  }
  func.func @transform_2(%arg0: i32, %arg1: i32) -> (i32, i32) {
    %c0_i32 = arith.constant 0 : i32
    %c0_i32_0 = arith.constant 0 : i32
    %c0_i32_1 = arith.constant 0 : i32
    return %c0_i32, %c0_i32_0 : i32, i32
  }
  func.func @transform_3(%arg0: i32, %arg1: i32) -> (i32, i32) {
    %c0_i32 = arith.constant 0 : i32
    %c0_i32_0 = arith.constant 0 : i32
    %c0_i32_1 = arith.constant 0 : i32
    return %c0_i32, %c0_i32_0 : i32, i32
  }
  func.func @transform_4(%arg0: i32, %arg1: i32) -> (i32, i32) {
    %c0_i32 = arith.constant 0 : i32
    %c0_i32_0 = arith.constant 0 : i32
    %c0_i32_1 = arith.constant 0 : i32
    return %c0_i32, %c0_i32_0 : i32, i32
  }
  func.func @transform_5(%arg0: i32, %arg1: i32) -> (i32, i32) {
    %c0_i32 = arith.constant 0 : i32
    %c0_i32_0 = arith.constant 0 : i32
    %c0_i32_1 = arith.constant 0 : i32
    return %c0_i32, %c0_i32_0 : i32, i32
  }
  func.func @transform_6(%arg0: i32, %arg1: i32) -> (i32, i32) {
    %c0_i32 = arith.constant 0 : i32
    %c0_i32_0 = arith.constant 0 : i32
    %c0_i32_1 = arith.constant 0 : i32
    return %c0_i32, %c0_i32_0 : i32, i32
  }
  func.func @transform_7(%arg0: i32, %arg1: i32) -> (i32, i32) {
    %c0_i32 = arith.constant 0 : i32
    %c0_i32_0 = arith.constant 0 : i32
    %c0_i32_1 = arith.constant 0 : i32
    return %c0_i32, %c0_i32_0 : i32, i32
  }
  func.func @transform_8(%arg0: i32, %arg1: i32) -> (i32, i32) {
    %c0_i32 = arith.constant 0 : i32
    return %arg0, %arg1 : i32, i32
  }
  func.func @transform_9(%arg0: i32, %arg1: i32) -> (i32, i32) {
    %c0_i32 = arith.constant 0 : i32
    %c0_i32_0 = arith.constant 0 : i32
    return %arg0, %c0_i32 : i32, i32
  }
}

</mosaic_0001>

<llo_original>
// kernel: tpu_custom_call.1
$region0: #{tpu_custom_call.1}
  #allocation0 [shape = 'u32[]', space=smem, size = 0x4, offset = 0x4, fixed_abs, tag = 'smem constant byte address 0x4 - core index']
  #allocation1 [shape = 'u32[144,128]{1,0:T(1,128)}', space=vmem, size = 0x12000, scoped, tag = 'internal scratch']
  #allocation2 [shape = 'f32[2,1]{1,0:T(2,128)}', space=vmem, size = 0x400, scoped, tag = 'scratch operand']
  #allocation3 [shape = 'f32[1,1]{1,0:T(1,128)S(1)}', space=vmem, size = 0x200, scoped, tag = 'scoped memory for tpu_custom_call.1']
  %s0 = inlined_call_operand.vmem [shape: f32[2,1], index: 0, kind: input, shape index: {}]
  %s1 = inlined_call_operand.vmem [shape: f32[128,2,1], index: 1, kind: input, shape index: {}]
  %s2 = inlined_call_operand.vmem [shape: f32[22,30], index: 2, kind: input, shape index: {}]
  %s3 = inlined_call_operand.vmem [shape: f32[1,30], index: 3, kind: input, shape index: {}]
  %s4 = inlined_call_operand.vmem [shape: f32[30,30], index: 4, kind: input, shape index: {}]
  %s5 = inlined_call_operand.vmem [shape: f32[1,30], index: 5, kind: input, shape index: {}]
  %s6 = inlined_call_operand.vmem [shape: f32[30,1], index: 6, kind: input, shape index: {}]
  %s7 = inlined_call_operand.<no memory space> [shape: f32[1,1], index: 7, kind: input, shape index: {}]
  %s8 = inlined_call_operand.hbm [shape: f32[2,128], index: 8, kind: output, shape index: {0}]
  %s9 = inlined_call_operand.hbm [shape: f32[2,22], index: 9, kind: output, shape index: {1}]
  %10 = xla_tuple %s8, %s9
  %s11 = sld [smem:[#allocation0]]
  $region61: #{tpu_custom_call.1} parent=0
    _
  %s13 = ssub.s32 1, %s11
  %s14 = scalar_select 0, %s13, %s11
  %v15 = vstv %s7
  %16 = vst [vmem:[#allocation3] sm:$0x1] %v15
  $region1: #{tpu_custom_call.1} parent=0
    #allocation4 [shape = 'u8[1024]{0}', space=vmem, size = 0x400, scoped, tag = 'output window, operand 0, single buffered']
    #allocation5 [shape = 's32[1]{0}', space=sflag, size = 0x4, scoped, tag = 'scoped memory for tpu_custom_call.1']
    #allocation6 [shape = 'u8[1024]{0}', space=vmem, size = 0x400, scoped, tag = 'output window, operand 1, single buffered']
    #allocation7 [shape = 's32[1]{0}', space=sflag, size = 0x4, scoped, tag = 'scoped memory for tpu_custom_call.1']
    %17 = vsyncpa [#allocation5], 0
    %18 = vsyncpa [#allocation7], 0
    // Predicated region
    $region2: #{tpu_custom_call.1} parent=1 // pred_check
      _
    $region3: #{tpu_custom_call.1} parent=1 // pred_check_branch
      %20 = sbr.rel (0) target = $region5
    $region4: #{tpu_custom_call.1} parent=1 // pred_region
      _
    $region5: #{tpu_custom_call.1} parent=1 // pred_fallthru
      _
    // Predicated region
    $region6: #{tpu_custom_call.1} parent=1 // pred_check
      _
    $region7: #{tpu_custom_call.1} parent=1 // pred_check_branch
      %22 = sbr.rel (0) target = $region9
    $region8: #{tpu_custom_call.1} parent=1 // pred_region
      _
    $region9: #{tpu_custom_call.1} parent=1 // pred_fallthru
      _
    // Predicated region
    $region10: #{tpu_custom_call.1} parent=1 // pred_check
      _
    $region11: #{tpu_custom_call.1} parent=1 // pred_check_branch
      %24 = sbr.rel (0) target = $region13
    $region12: #{tpu_custom_call.1} parent=1 // pred_region
      _
    $region13: #{tpu_custom_call.1} parent=1 // pred_fallthru
      _
    // Predicated region
    $region14: #{tpu_custom_call.1} parent=1 // pred_check
      _
    $region15: #{tpu_custom_call.1} parent=1 // pred_check_branch
      %26 = sbr.rel (0) target = $region17
    $region16: #{tpu_custom_call.1} parent=1 // pred_region
      _
    $region17: #{tpu_custom_call.1} parent=1 // pred_fallthru
      _
    // Predicated region
    $region18: #{tpu_custom_call.1} parent=1 // pred_check
      _
    $region19: #{tpu_custom_call.1} parent=1 // pred_check_branch
      %28 = sbr.rel (0) target = $region21
    $region20: #{tpu_custom_call.1} parent=1 // pred_region
      _
    $region21: #{tpu_custom_call.1} parent=1 // pred_fallthru
      _
    // Predicated region
    $region22: #{tpu_custom_call.1} parent=1 // pred_check
      _
    $region23: #{tpu_custom_call.1} parent=1 // pred_check_branch
      %30 = sbr.rel (0) target = $region25
    $region24: #{tpu_custom_call.1} parent=1 // pred_region
      _
    $region25: #{tpu_custom_call.1} parent=1 // pred_fallthru
      _
    // Predicated region
    $region26: #{tpu_custom_call.1} parent=1 // pred_check
      _
    $region27: #{tpu_custom_call.1} parent=1 // pred_check_branch
      %32 = sbr.rel (0) target = $region29
    $region28: #{tpu_custom_call.1} parent=1 // pred_region
      _
    $region29: #{tpu_custom_call.1} parent=1 // pred_fallthru
      _
    // Predicated region
    $region30: #{tpu_custom_call.1} parent=1 // pred_check
      _
    $region31: #{tpu_custom_call.1} parent=1 // pred_check_branch
      %34 = sbr.rel (0) target = $region33
    $region32: #{tpu_custom_call.1} parent=1 // pred_region
      _
    $region33: #{tpu_custom_call.1} parent=1 // pred_fallthru
      _
    %p35 = scmp.eq.s32.totalorder 0, 0
    // Predicated region
    $region34: #{tpu_custom_call.1} parent=1 // pred_check
      %p36 = pneg %p35
    $region35: #{tpu_custom_call.1} parent=1 // pred_check_branch
      %38 = sbr.rel (%p36) target = $region37
    $region36: #{tpu_custom_call.1} parent=1 // pred_region
      %vm39 = vcmask 173056
      %40 = vst.msk [vmem:[#allocation6] sm:$0x3] %vm39, 0.0
      %v41 = vld [vmem:[%s0] sm:$0x3]
      %vm42 = vcmask 1024
      %43 = vst.msk [vmem:[#allocation2] sm:$0x3] %vm42, %v41
    $region37: #{tpu_custom_call.1} parent=1 // pred_fallthru
      _
    %v44 = vld [vmem:[%s2] sm:$0xff]
    %v45 = vld [vmem:[%s2 + $0x8] sm:$0xff]
    %v46 = vld [vmem:[%s2 + $0x10] sm:$0x3f]
    %v47 = vld [vmem:[%s3] sm:$0x1]
    %v48 = vld [vmem:[%s4] sm:$0xff]
    %v49 = vld [vmem:[%s4 + $0x8] sm:$0xff]
    %v50 = vld [vmem:[%s4 + $0x10] sm:$0xff]
    %v51 = vld [vmem:[%s4 + $0x18] sm:$0x3f]
    %v52 = vld [vmem:[%s5] sm:$0x1]
    %v53 = vld [vmem:[%s6] sm:$0xff]
    %v54 = vld [vmem:[%s6 + $0x8] sm:$0xff]
    %v55 = vld [vmem:[%s6 + $0x10] sm:$0xff]
    %v56 = vld [vmem:[%s6 + $0x18] sm:$0x3f]
    %v57 = vld [vmem:[#allocation3] sm:$0x1]
    %v58 = vlaneseq
    %v59 = vshrl.u32 %v58, 7
    %v60 = vadd.s32 %v59, 8
    %v61 = vadd.s32 %v59, 16
    %v62 = vlaneseq
    %v63 = vand.u32 %v62, 127
    %v64 = vadd.s32 %v59, 1
    %v65 = vadd.s32 %v60, 1
    %v66 = vadd.s32 %v61, 1
    %vm67 = vcmp.eq.s32.totalorder %v63, %v64
    %vm68 = vcmp.eq.s32.totalorder %v63, %v65
    %vm69 = vcmp.eq.s32.totalorder %v63, %v66
    %vm70 = vcmp.ge.s32.totalorder %v63, 2
    %vm71 = vmand %vm67, %vm70
    %vm72 = vmand %vm68, %vm70
    %vm73 = vmand %vm69, %vm70
    %v74 = vsel %vm71, 1.0, 0.0
    %v75 = vsel %vm72, 1.0, 0.0
    %v76 = vsel %vm73, 1.0, 0.0
    %v77 = vld [vmem:[#allocation6] sm:$0x3]
    %v78 = vld [vmem:[#allocation2] sm:$0x3]
    %s79 = smul.u32 0, 128
    %s80 = ssub.s32 8, %s79
    %p81 = scmp.lt.s32.totalorder %s80, 128
    %s82 = scalar_select %p81, %s80, 128
    // While loop
    $region38: #{tpu_custom_call.1} parent=1 // loop_pre_header
      _
    $region39: #{tpu_custom_call.1} parent=1 // loop_header
      %s84 = sphi 0, %s86
      %p85 = scmp.ge.s32.totalorder %s84, %s82
      %v89 = vphi %v77, %v191
      %v90 = vphi %v78, %v438
      %v91 = vphi 0.0, %v451
    $region40: #{tpu_custom_call.1} parent=1 // loop_header_branch
      %88 = sbr.rel (%p85) target = $region44
    $region41: #{tpu_custom_call.1} parent=1 // loop_body
      %s92 = smul.u32 %s84, 2
      %s93 = scalar_lea.vmem %s1, %s92
      %v94 = vld [vmem:[%s93] sm:$0x3]
      %vm95 = vcmp.eq.s32.totalorder %v63, 0
      %97 = vset.pattern.permute.xlu0 0
      %98 = vperm.xlu0 %97, %v90
      %v99 = vpop.permute.xlu0 %98
      %v101 = vsel %vm95, 1, 0
      %vm102 = vcmp.eq.s32.totalorder %v101, 1
      %v103 = vsel %vm102, %v99, 0.0
      %vm104 = vcmask 179200
      %v106 = vsel %vm104, %v89, 0
      %vm108 = vcmask 1045504
      %v110 = vsel %vm108, %v76, 0
      %112 = vmatprep.subr.mxu0 0.0
      %113 = vmatpush1.msra.mxu0 %v74
      %114 = vmatprep.subr.mxu0 0.0
      %115 = vmatpush1.msra.mxu0 %v75
      %116 = vmatprep.subr.mxu0 0.0
      %117 = vmatpush1.msra.mxu0 %v110
      %118 = vmatprep.subr.mxu0 0.0
      %119 = vmatpush1.msra.mxu0 0.0
      %120 = vmatprep.subr.mxu0 0.0
      %121 = vmatpush1.msra.mxu0 0.0
      %122 = vmatprep.subr.mxu0 0.0
      %123 = vmatpush1.msra.mxu0 0.0
      %124 = vmatprep.subr.mxu0 0.0
      %125 = vmatpush1.msra.mxu0 0.0
      %126 = vmatprep.subr.mxu0 0.0
      %127 = vmatpush1.msra.mxu0 0.0
      %128 = vmatprep.subr.mxu0 0.0
      %129 = vmatpush1.msra.mxu0 0.0
      %130 = vmatprep.subr.mxu0 0.0
      %131 = vmatpush1.msra.mxu0 0.0
      %132 = vmatprep.subr.mxu0 0.0
      %133 = vmatpush1.msra.mxu0 0.0
      %134 = vmatprep.subr.mxu0 0.0
      %135 = vmatpush1.msra.mxu0 0.0
      %136 = vmatprep.subr.mxu0 0.0
      %137 = vmatpush1.msra.mxu0 0.0
      %138 = vmatprep.subr.mxu0 0.0
      %139 = vmatpush1.msra.mxu0 0.0
      %140 = vmatprep.subr.mxu0 0.0
      %141 = vmatpush1.msra.mxu0 0.0
      %142 = vmatprep.subr.mxu0 0.0
      %143 = vmatpush1.msra.mxu0 0.0
      %144 = vmatprep.subr.mxu0 0.0
      %145 = vmatpush1.msra.mxu0 0.0
      %146 = vmatprep.subr.mxu0 0.0
      %147 = vmatpush1.msra.mxu0 0.0
      %148 = vmatprep.subr.mxu0 0.0
      %149 = vmatpush1.msra.mxu0 0.0
      %150 = vmatprep.subr.mxu0 0.0
      %151 = vmatpush1.msra.mxu0 0.0
      %152 = vmatprep.subr.mxu0 0.0
      %153 = vmatpush1.msra.mxu0 0.0
      %154 = vmatprep.subr.mxu0 0.0
      %155 = vmatpush1.msra.mxu0 0.0
      %156 = vmatprep.subr.mxu0 0.0
      %157 = vmatpush1.msra.mxu0 0.0
      %158 = vmatprep.subr.mxu0 0.0
      %159 = vmatpush1.msra.mxu0 0.0
      %160 = vmatprep.subr.mxu0 0.0
      %161 = vmatpush1.msra.mxu0 0.0
      %162 = vmatprep.subr.mxu0 0.0
      %163 = vmatpush1.msra.mxu0 0.0
      %164 = vmatprep.subr.mxu0 0.0
      %165 = vmatpush1.msra.mxu0 0.0
      %166 = vmatprep.subr.mxu0 0.0
      %167 = vmatpush1.msra.mxu0 0.0
      %168 = vmatprep.subr.mxu0 0.0
      %169 = vmatpush1.msra.mxu0 0.0
      %170 = vmatprep.subr.mxu0 0.0
      %171 = vmatpush1.msra.mxu0 0.0
      %172 = vmatprep.subr.mxu0 0.0
      %173 = vmatpush1.msra.mxu0 0.0
      %174 = vmatprep.subr.mxu0 0.0
      %175 = vmatpush1.msra.mxu0 0.0
      %176 = vmatprep.mubr.f32.mxu0 0.0
      %177 = vmatmul.mubr.f32.gmra.mrb[0].mxu0 %v106
      %v178 = vpop.f32.mrb[0].mxu0
      %v179 = vadd.f32 %v103, %v178
      %v180 = vpop.f32.mrb[0].mxu0
      %181 = vdwg.mxu0
      %vm182 = vcmp.eq.s32.totalorder %v63, 1
      %184 = vset.pattern.permute.xlu0 0
      %185 = vperm.xlu0 %184, %v94
      %v186 = vpop.permute.xlu0 %185
      %v188 = vsel %vm182, 1, 0
      %vm189 = vcmp.eq.s32.totalorder %v188, 1
      %v190 = vsel %vm189, %v186, 0.0
      %v191 = vadd.f32 %v179, %v190
      %v193 = vlaneseq
      %v194 = vshrl.u32 %v193, 7
      %v195 = vsub.s32 0, %v194
      %v196 = vrot.slane %v47, %v195
      %v199 = vsel %vm104, %v191, 0
      %v202 = vsel %vm108, %v46, 0
      %204 = vmatprep.subr.mxu0 0.0
      %205 = vmatpush1.msra.mxu0 %v44
      %206 = vmatprep.subr.mxu0 0.0
      %207 = vmatpush1.msra.mxu0 %v45
      %208 = vmatprep.subr.mxu0 0.0
      %209 = vmatpush1.msra.mxu0 %v202
      %210 = vmatprep.subr.mxu0 0.0
      %211 = vmatpush1.msra.mxu0 0.0
      %212 = vmatprep.subr.mxu0 0.0
      %213 = vmatpush1.msra.mxu0 0.0
      %214 = vmatprep.subr.mxu0 0.0
      %215 = vmatpush1.msra.mxu0 0.0
      %216 = vmatprep.subr.mxu0 0.0
      %217 = vmatpush1.msra.mxu0 0.0
      %218 = vmatprep.subr.mxu0 0.0
      %219 = vmatpush1.msra.mxu0 0.0
      %220 = vmatprep.subr.mxu0 0.0
      %221 = vmatpush1.msra.mxu0 0.0
      %222 = vmatprep.subr.mxu0 0.0
      %223 = vmatpush1.msra.mxu0 0.0
      %224 = vmatprep.subr.mxu0 0.0
      %225 = vmatpush1.msra.mxu0 0.0
      %226 = vmatprep.subr.mxu0 0.0
      %227 = vmatpush1.msra.mxu0 0.0
      %228 = vmatprep.subr.mxu0 0.0
      %229 = vmatpush1.msra.mxu0 0.0
      %230 = vmatprep.subr.mxu0 0.0
      %231 = vmatpush1.msra.mxu0 0.0
      %232 = vmatprep.subr.mxu0 0.0
      %233 = vmatpush1.msra.mxu0 0.0
      %234 = vmatprep.subr.mxu0 0.0
      %235 = vmatpush1.msra.mxu0 0.0
      %236 = vmatprep.subr.mxu0 0.0
      %237 = vmatpush1.msra.mxu0 0.0
      %238 = vmatprep.subr.mxu0 0.0
      %239 = vmatpush1.msra.mxu0 0.0
      %240 = vmatprep.subr.mxu0 0.0
      %241 = vmatpush1.msra.mxu0 0.0
      %242 = vmatprep.subr.mxu0 0.0
      %243 = vmatpush1.msra.mxu0 0.0
      %244 = vmatprep.subr.mxu0 0.0
      %245 = vmatpush1.msra.mxu0 0.0
      %246 = vmatprep.subr.mxu0 0.0
      %247 = vmatpush1.msra.mxu0 0.0
      %248 = vmatprep.subr.mxu0 0.0
      %249 = vmatpush1.msra.mxu0 0.0
      %250 = vmatprep.subr.mxu0 0.0
      %251 = vmatpush1.msra.mxu0 0.0
      %252 = vmatprep.subr.mxu0 0.0
      %253 = vmatpush1.msra.mxu0 0.0
      %254 = vmatprep.subr.mxu0 0.0
      %255 = vmatpush1.msra.mxu0 0.0
      %256 = vmatprep.subr.mxu0 0.0
      %257 = vmatpush1.msra.mxu0 0.0
      %258 = vmatprep.subr.mxu0 0.0
      %259 = vmatpush1.msra.mxu0 0.0
      %260 = vmatprep.subr.mxu0 0.0
      %261 = vmatpush1.msra.mxu0 0.0
      %262 = vmatprep.subr.mxu0 0.0
      %263 = vmatpush1.msra.mxu0 0.0
      %264 = vmatprep.subr.mxu0 0.0
      %265 = vmatpush1.msra.mxu0 0.0
      %266 = vmatprep.subr.mxu0 0.0
      %267 = vmatpush1.msra.mxu0 0.0
      %268 = vmatprep.mubr.f32.mxu0 0.0
      %269 = vmatmul.mubr.f32.gmra.mrb[0].mxu0 %v199
      %v270 = vpop.f32.mrb[0].mxu0
      %v271 = vadd.f32 %v196, %v270
      %v272 = vpop.f32.mrb[0].mxu0
      %273 = vdwg.mxu0
      %v274 = vtanh.pop %v271
      %v276 = vlaneseq
      %v277 = vshrl.u32 %v276, 7
      %v278 = vsub.s32 0, %v277
      %v279 = vrot.slane %v52, %v278
      %vm281 = vcmask 244736
      %v283 = vsel %vm281, %v274, 0
      %v286 = vsel %vm108, %v51, 0
      %288 = vmatprep.subr.mxu0 0.0
      %289 = vmatpush1.msra.mxu0 %v48
      %290 = vmatprep.subr.mxu0 0.0
      %291 = vmatpush1.msra.mxu0 %v49
      %292 = vmatprep.subr.mxu0 0.0
      %293 = vmatpush1.msra.mxu0 %v50
      %294 = vmatprep.subr.mxu0 0.0
      %295 = vmatpush1.msra.mxu0 %v286
      %296 = vmatprep.subr.mxu0 0.0
      %297 = vmatpush1.msra.mxu0 0.0
      %298 = vmatprep.subr.mxu0 0.0
      %299 = vmatpush1.msra.mxu0 0.0
      %300 = vmatprep.subr.mxu0 0.0
      %301 = vmatpush1.msra.mxu0 0.0
      %302 = vmatprep.subr.mxu0 0.0
      %303 = vmatpush1.msra.mxu0 0.0
      %304 = vmatprep.subr.mxu0 0.0
      %305 = vmatpush1.msra.mxu0 0.0
      %306 = vmatprep.subr.mxu0 0.0
      %307 = vmatpush1.msra.mxu0 0.0
      %308 = vmatprep.subr.mxu0 0.0
      %309 = vmatpush1.msra.mxu0 0.0
      %310 = vmatprep.subr.mxu0 0.0
      %311 = vmatpush1.msra.mxu0 0.0
      %312 = vmatprep.subr.mxu0 0.0
      %313 = vmatpush1.msra.mxu0 0.0
      %314 = vmatprep.subr.mxu0 0.0
      %315 = vmatpush1.msra.mxu0 0.0
      %316 = vmatprep.subr.mxu0 0.0
      %317 = vmatpush1.msra.mxu0 0.0
      %318 = vmatprep.subr.mxu0 0.0
      %319 = vmatpush1.msra.mxu0 0.0
      %320 = vmatprep.subr.mxu0 0.0
      %321 = vmatpush1.msra.mxu0 0.0
      %322 = vmatprep.subr.mxu0 0.0
      %323 = vmatpush1.msra.mxu0 0.0
      %324 = vmatprep.subr.mxu0 0.0
      %325 = vmatpush1.msra.mxu0 0.0
      %326 = vmatprep.subr.mxu0 0.0
      %327 = vmatpush1.msra.mxu0 0.0
      %328 = vmatprep.subr.mxu0 0.0
      %329 = vmatpush1.msra.mxu0 0.0
      %330 = vmatprep.subr.mxu0 0.0
      %331 = vmatpush1.msra.mxu0 0.0
      %332 = vmatprep.subr.mxu0 0.0
      %333 = vmatpush1.msra.mxu0 0.0
      %334 = vmatprep.subr.mxu0 0.0
      %335 = vmatpush1.msra.mxu0 0.0
      %336 = vmatprep.subr.mxu0 0.0
      %337 = vmatpush1.msra.mxu0 0.0
      %338 = vmatprep.subr.mxu0 0.0
      %339 = vmatpush1.msra.mxu0 0.0
      %340 = vmatprep.subr.mxu0 0.0
      %341 = vmatpush1.msra.mxu0 0.0
      %342 = vmatprep.subr.mxu0 0.0
      %343 = vmatpush1.msra.mxu0 0.0
      %344 = vmatprep.subr.mxu0 0.0
      %345 = vmatpush1.msra.mxu0 0.0
      %346 = vmatprep.subr.mxu0 0.0
      %347 = vmatpush1.msra.mxu0 0.0
      %348 = vmatprep.subr.mxu0 0.0
      %349 = vmatpush1.msra.mxu0 0.0
      %350 = vmatprep.subr.mxu0 0.0
      %351 = vmatpush1.msra.mxu0 0.0
      %352 = vmatprep.mubr.f32.mxu0 0.0
      %353 = vmatmul.mubr.f32.gmra.mrb[0].mxu0 %v283
      %v354 = vpop.f32.mrb[0].mxu0
      %v355 = vadd.f32 %v279, %v354
      %v356 = vpop.f32.mrb[0].mxu0
      %357 = vdwg.mxu0
      %v358 = vtanh.pop %v355
      %v360 = vlaneseq
      %v361 = vshrl.u32 %v360, 7
      %v362 = vsub.s32 0, %v361
      %v363 = vrot.slane %v57, %v362
      %v366 = vsel %vm281, %v358, 0
      %v369 = vsel %vm108, %v56, 0
      %371 = vmatprep.subr.mxu0 0.0
      %372 = vmatpush1.msra.mxu0 %v53
      %373 = vmatprep.subr.mxu0 0.0
      %374 = vmatpush1.msra.mxu0 %v54
      %375 = vmatprep.subr.mxu0 0.0
      %376 = vmatpush1.msra.mxu0 %v55
      %377 = vmatprep.subr.mxu0 0.0
      %378 = vmatpush1.msra.mxu0 %v369
      %379 = vmatprep.subr.mxu0 0.0
      %380 = vmatpush1.msra.mxu0 0.0
      %381 = vmatprep.subr.mxu0 0.0
      %382 = vmatpush1.msra.mxu0 0.0
      %383 = vmatprep.subr.mxu0 0.0
      %384 = vmatpush1.msra.mxu0 0.0
      %385 = vmatprep.subr.mxu0 0.0
      %386 = vmatpush1.msra.mxu0 0.0
      %387 = vmatprep.subr.mxu0 0.0
      %388 = vmatpush1.msra.mxu0 0.0
      %389 = vmatprep.subr.mxu0 0.0
      %390 = vmatpush1.msra.mxu0 0.0
      %391 = vmatprep.subr.mxu0 0.0
      %392 = vmatpush1.msra.mxu0 0.0
      %393 = vmatprep.subr.mxu0 0.0
      %394 = vmatpush1.msra.mxu0 0.0
      %395 = vmatprep.subr.mxu0 0.0
      %396 = vmatpush1.msra.mxu0 0.0
      %397 = vmatprep.subr.mxu0 0.0
      %398 = vmatpush1.msra.mxu0 0.0
      %399 = vmatprep.subr.mxu0 0.0
      %400 = vmatpush1.msra.mxu0 0.0
      %401 = vmatprep.subr.mxu0 0.0
      %402 = vmatpush1.msra.mxu0 0.0
      %403 = vmatprep.subr.mxu0 0.0
      %404 = vmatpush1.msra.mxu0 0.0
      %405 = vmatprep.subr.mxu0 0.0
      %406 = vmatpush1.msra.mxu0 0.0
      %407 = vmatprep.subr.mxu0 0.0
      %408 = vmatpush1.msra.mxu0 0.0
      %409 = vmatprep.subr.mxu0 0.0
      %410 = vmatpush1.msra.mxu0 0.0
      %411 = vmatprep.subr.mxu0 0.0
      %412 = vmatpush1.msra.mxu0 0.0
      %413 = vmatprep.subr.mxu0 0.0
      %414 = vmatpush1.msra.mxu0 0.0
      %415 = vmatprep.subr.mxu0 0.0
      %416 = vmatpush1.msra.mxu0 0.0
      %417 = vmatprep.subr.mxu0 0.0
      %418 = vmatpush1.msra.mxu0 0.0
      %419 = vmatprep.subr.mxu0 0.0
      %420 = vmatpush1.msra.mxu0 0.0
      %421 = vmatprep.subr.mxu0 0.0
      %422 = vmatpush1.msra.mxu0 0.0
      %423 = vmatprep.subr.mxu0 0.0
      %424 = vmatpush1.msra.mxu0 0.0
      %425 = vmatprep.subr.mxu0 0.0
      %426 = vmatpush1.msra.mxu0 0.0
      %427 = vmatprep.subr.mxu0 0.0
      %428 = vmatpush1.msra.mxu0 0.0
      %429 = vmatprep.subr.mxu0 0.0
      %430 = vmatpush1.msra.mxu0 0.0
      %431 = vmatprep.subr.mxu0 0.0
      %432 = vmatpush1.msra.mxu0 0.0
      %433 = vmatprep.subr.mxu0 0.0
      %434 = vmatpush1.msra.mxu0 0.0
      %435 = vmatprep.mubr.f32.mxu0 0.0
      %436 = vmatmul.mubr.f32.gmra.mrb[0].mxu0 %v366
      %v437 = vpop.f32.mrb[0].mxu0
      %v438 = vadd.f32 %v363, %v437
      %v439 = vpop.f32.mrb[0].mxu0
      %440 = vdwg.mxu0
      %v441 = vstv %s84
      %vm442 = vcmp.eq.s32.totalorder %v63, %v441
      %444 = vset.pattern.permute.xlu0 0
      %445 = vperm.xlu0 %444, %v438
      %v446 = vpop.permute.xlu0 %445
      %v448 = vsel %vm442, 1, 0
      %vm449 = vcmp.eq.s32.totalorder %v448, 1
      %v450 = vsel %vm449, %v446, 0.0
      %v451 = vadd.f32 %v91, %v450
    $region42: #{tpu_custom_call.1} parent=1 // loop_footer
      %s86 = sadd.s32 %s84, 1
    $region43: #{tpu_custom_call.1} parent=1 // loop_footer_branch
      %83 = sbr.rel target = $region39
    $region44: #{tpu_custom_call.1} parent=1 // loop_exit
      _
    %452 = vst [vmem:[#allocation4] sm:$0x3] %v91
    %vm453 = vcmask 173056
    %454 = vst.msk [vmem:[#allocation6] sm:$0x3] %vm453, %v89
    %vm455 = vcmask 1024
    %456 = vst.msk [vmem:[#allocation2] sm:$0x3] %vm455, %v90
    // Predicated region
    $region45: #{tpu_custom_call.1} parent=1 // pred_check
      _
    $region46: #{tpu_custom_call.1} parent=1 // pred_check_branch
      %458 = sbr.rel (0) target = $region48
    $region47: #{tpu_custom_call.1} parent=1 // pred_region
      %s460 = ssub.s32 32, 32
      %461 = vsyncadd [#allocation5], %s460
      %s463 = sshll.u32 [#allocation4], 4
      %s464 = int_to_ptr.vmem [resolvable:$true] %s463
      %466 = dma.vmem_to_hbm [thread:$0]  %s464, 32, %s8, [#allocation5]
    $region48: #{tpu_custom_call.1} parent=1 // pred_fallthru
      _
    // Predicated region
    $region49: #{tpu_custom_call.1} parent=1 // pred_check
      _
    $region50: #{tpu_custom_call.1} parent=1 // pred_check_branch
      %468 = sbr.rel (0) target = $region52
    $region51: #{tpu_custom_call.1} parent=1 // pred_region
      %s470 = ssub.s32 32, 32
      %471 = vsyncadd [#allocation7], %s470
      %s473 = sshll.u32 [#allocation6], 4
      %s474 = int_to_ptr.vmem [resolvable:$true] %s473
      %476 = dma.vmem_to_hbm [thread:$0]  %s474, 32, %s9, [#allocation7]
    $region52: #{tpu_custom_call.1} parent=1 // pred_fallthru
      _
    // Predicated region
    $region53: #{tpu_custom_call.1} parent=1 // pred_check
      _
    $region54: #{tpu_custom_call.1} parent=1 // pred_check_branch
      %478 = sbr.rel (0) target = $region56
    $region55: #{tpu_custom_call.1} parent=1 // pred_region
      %479 = dma.done [#allocation5], 32
    $region56: #{tpu_custom_call.1} parent=1 // pred_fallthru
      _
    // Predicated region
    $region57: #{tpu_custom_call.1} parent=1 // pred_check
      _
    $region58: #{tpu_custom_call.1} parent=1 // pred_check_branch
      %481 = sbr.rel (0) target = $region60
    $region59: #{tpu_custom_call.1} parent=1 // pred_region
      %482 = dma.done [#allocation7], 32
    $region60: #{tpu_custom_call.1} parent=1 // pred_fallthru
      _
    %483 = vsyncpa [#allocation5], 1
    %484 = vsyncpa [#allocation7], 1

</llo_original>
